<compile_context>
chip_gen: v7x
topology: tpu7x:2x2x1
jax: 0.10.0
libtpu: 0.0.40
codegen_flags: <defaults>
</compile_context>

<pallas_src>
import jax
import jax.numpy as jnp
from jax.experimental import pallas as pl
from jax.experimental.pallas import tpu as pltpu

EPS = 1e-5
NEG_SLOPE = 0.2          # matches nn.LeakyReLU(0.2) in the PyTorch spec
FPAD = 128               # lane-dense padded feature width


def _leaky_relu(v):
    # max(v, a*v) == leaky_relu(v, a) for 0 < a < 1 (one VALU op vs cmp+sel).
    return jnp.maximum(v, NEG_SLOPE * v)


def compnet_kernel(x_ref, w1_ref, wr_ref, gb_ref, o_ref):
    """Full CompNet forward on one VMEM-resident batch.

    x_ref : (N, in_dims)   f32  — unpadded input
    w1_ref: (in_dims, 128) bf16 — layer1 weight, cols zero-padded to 128
    wr_ref: (3, 128, 128)  bf16 — BasicBlock a/b + layer3 weights, packed
    gb_ref: (4, 2, 128)    f32  — per-layer [gamma; beta], packed (pad lanes 0)
    o_ref : (N, 128)       f32  — lane-dense output (cols >= out_dims are 0)
    """
    inv_n = 1.0 / x_ref.shape[0]  # static

    def matmul(h, w):
        # bf16 operands to the MXU, f32 accumulation.
        return jnp.dot(h.astype(jnp.bfloat16), w,
                       preferred_element_type=jnp.float32)

    def bn_act(y, layer, activate):
        # Training-mode BatchNorm1d folded to one full-tile mul+add:
        #   scale = gamma * rsqrt(var + eps);  shift = beta - mean * scale
        # Linear biases were dropped upstream: any per-feature constant is
        # cancelled exactly by the batch-mean subtraction (training mode only).
        s1 = jnp.sum(y, axis=0, keepdims=True)           # XLU, overlaps
        s2 = jnp.sum(y * y, axis=0, keepdims=True)       # with VPU/MXU work
        mean = s1 * inv_n
        var = jnp.maximum(s2 * inv_n - mean * mean, 0.0)
        gb = gb_ref[layer]                               # (2, 128), static idx
        scale = gb[0:1, :] * jax.lax.rsqrt(var + EPS)    # (1, F) row ops
        shift = gb[1:2, :] - mean * scale
        out = y * scale + shift
        return _leaky_relu(out) if activate else out

    x = x_ref[...]

    # layer1: Linear -> BN -> LeakyReLU(0.2)
    h1 = bn_act(matmul(x, w1_ref[...]), 0, True)

    # layer2: BasicBlock(out_dims, out_dims), shortcut=None -> identity residual
    y = bn_act(matmul(h1, wr_ref[0]), 1, True)
    y = bn_act(matmul(y, wr_ref[1]), 2, False)
    y = _leaky_relu(y + h1)

    # layer3: Linear -> BN (no activation)
    o_ref[...] = bn_act(matmul(y, wr_ref[2]), 3, False).astype(o_ref.dtype)


def compnet_forward(x, w1, w_rest, gb, out_dims):
    """x: (N, in_dims) f32.  w1/w_rest/gb: packed operands from pack_params()."""
    n, in_dims = x.shape

    # VMEM footprint: x + output + ~5 live (N,128) f32 intermediates + weights.
    act_bytes = n * FPAD * 4
    resident = (x.size * 4 + 6 * act_bytes
                + w1.size * 2 + w_rest.size * 2 + gb.size * 4)
    vmem_cap = 48 << 20  # conservative across v5e/v6e (128 MiB) and v7x (64 MiB)
    if resident > vmem_cap:
        # TODO(synk): for batches past the VMEM budget, switch to an N-tiled
        # grid with two-pass BatchNorm (accumulate per-feature sum/sumsq over
        # an "arbitrary" axis, then a normalize pass) and a "parallel" batch
        # axis / cross-core reduction so v7x's second TensorCore is used.
        raise ValueError("batch too large for whole-batch-resident kernel")
    vmem_limit = int(min(max(2 * resident, 16 << 20), vmem_cap))

    flops = 2 * n * (in_dims * FPAD + 3 * FPAD * FPAD)
    bytes_accessed = (x.size * 4 + w1.size * 2 + w_rest.size * 2
                      + gb.size * 4 + n * FPAD * 4)

    def full_spec(a):
        # Whole-array block: legal by divisibility or by equalling full dims.
        return pl.BlockSpec(a.shape, lambda: (0,) * a.ndim)

    out_padded = pl.pallas_call(
        compnet_kernel,
        out_shape=jax.ShapeDtypeStruct((n, FPAD), jnp.float32),
        grid=(),
        in_specs=[full_spec(x), full_spec(w1), full_spec(w_rest), full_spec(gb)],
        out_specs=pl.BlockSpec((n, FPAD), lambda: (0, 0)),
        compiler_params=pltpu.CompilerParams(vmem_limit_bytes=vmem_limit),
        cost_estimate=pl.CostEstimate(flops=flops,
                                      transcendentals=4 * FPAD,
                                      bytes_accessed=bytes_accessed),
    )(x, w1, w_rest, gb)

    # TODO(synk): in production fuse this column slice into the consumer (or
    # emit bf16) instead of a separate HBM round trip.
    return out_padded[:, :out_dims]


def init_params(key, in_dims, out_dims):
    """PyTorch-shaped parameters: 4 layers of (W(fin,fout), b, gamma, beta).

    (W stored transposed vs. PyTorch's (fout, fin) so the math is x @ W.)
    """
    keys = jax.random.split(key, 16)
    ki = iter(keys)

    def layer(fin, fout):
        bound = 1.0 / jnp.sqrt(fin)
        w = jax.random.uniform(next(ki), (fin, fout), jnp.float32, -bound, bound)
        b = jax.random.uniform(next(ki), (fout,), jnp.float32, -bound, bound)
        gamma = 1.0 + 0.1 * jax.random.normal(next(ki), (fout,), jnp.float32)
        beta = 0.1 * jax.random.normal(next(ki), (fout,), jnp.float32)
        return (w, b, gamma, beta)

    return (
        layer(in_dims, out_dims),   # layer1
        layer(out_dims, out_dims),  # BasicBlock linear a
        layer(out_dims, out_dims),  # BasicBlock linear b
        layer(out_dims, out_dims),  # layer3
    )


def pack_params(params):
    """Kernel operands:
       w1     : (in_dims, 128) bf16  — layer1 weight, cols zero-padded
       w_rest : (3, 128, 128)  bf16  — layers 2a/2b/3 weights, zero-padded
       gb     : (4, 2, 128)    f32   — [gamma; beta] per layer, pad lanes 0
    Linear biases are intentionally dropped: training-mode BatchNorm's mean
    subtraction cancels any per-feature constant exactly.
    """
    (w1, _b1, g1, be1), l2a, l2b, l3 = params

    def gb_rows(g, be, fout):
        return (jnp.zeros((2, FPAD), jnp.float32)
                .at[0, :fout].set(g)
                .at[1, :fout].set(be))

    in_dims, fout1 = w1.shape
    w1p = (jnp.zeros((in_dims, FPAD), jnp.float32)
           .at[:, :fout1].set(w1)
           .astype(jnp.bfloat16))

    w_rest, gbs = [], [gb_rows(g1, be1, fout1)]
    for (w, _b, g, be) in (l2a, l2b, l3):
        fin, fout = w.shape
        w_rest.append(jnp.zeros((FPAD, FPAD), jnp.float32)
                      .at[:fin, :fout].set(w)
                      .astype(jnp.bfloat16))
        gbs.append(gb_rows(g, be, fout))

    return w1p, jnp.stack(w_rest), jnp.stack(gbs)


def compnet_reference(x, params):
    """Faithful pure-JAX f32 reference of the PyTorch forward (with bias,
    sequential training-mode BN), for correctness checking."""
    def linear_bn(h, w, b, g, be):
        y = h @ w + b
        mean = jnp.mean(y, axis=0, keepdims=True)
        var = jnp.mean((y - mean) ** 2, axis=0, keepdims=True)
        return (y - mean) / jnp.sqrt(var + EPS) * g + be

    (w1, b1, g1, be1), (w2a, b2a, g2a, be2a), (w2b, b2b, g2b, be2b), \
        (w3, b3, g3, be3) = params
    h1 = _leaky_relu(linear_bn(x, w1, b1, g1, be1))
    y = _leaky_relu(linear_bn(h1, w2a, b2a, g2a, be2a))
    y = linear_bn(y, w2b, b2b, g2b, be2b)
    y = _leaky_relu(y + h1)
    return linear_bn(y, w3, b3, g3, be3)


if __name__ == "__main__":
    batch = 128        # full MXU row tile (perf review item #1), still small
    in_dims = 16
    out_dims = 32

    key = jax.random.PRNGKey(0)
    k_x, k_p = jax.random.split(key)
    x = jax.random.normal(k_x, (batch, in_dims), jnp.float32)
    params = init_params(k_p, in_dims, out_dims)
    w1, w_rest, gb = pack_params(params)

    out = compnet_forward(x, w1, w_rest, gb, out_dims)
    out = jax.block_until_ready(out)

    ref = compnet_reference(x, params)
    assert out.shape == (batch, out_dims)
    # Tolerance reflects bf16 MXU operands (rel. rounding ~2^-9 per product)
    # propagated through 4 batch-normalized (unit-scale) layers.
    assert jnp.allclose(out, ref, atol=5e-2, rtol=5e-2), "mismatch vs JAX reference"

    print("KERNEL_OK")
</pallas_src>

<mosaic_0001>
module attributes {stable_mosaic.version = 11 : i64} {
  func.func @compnet_kernel(%arg0: memref<128x16xf32, #tpu.memory_space<vmem>>, %arg1: memref<16x128xbf16, #tpu.memory_space<vmem>>, %arg2: memref<3x128x128xbf16, #tpu.memory_space<vmem>>, %arg3: memref<4x2x128xf32, #tpu.memory_space<vmem>>, %arg4: memref<128x128xf32, #tpu.memory_space<vmem>>) attributes {dimension_semantics = [], scalar_prefetch = 0 : i64, scratch_operands = 0 : i64, tpu.core_type = #tpu.core_type<tc>} {
    %c0 = arith.constant 0 : index
    %c0_0 = arith.constant 0 : index
    %0 = vector.load %arg0[%c0, %c0_0] : memref<128x16xf32, #tpu.memory_space<vmem>>, vector<128x16xf32>
    %c0_1 = arith.constant 0 : index
    %c0_2 = arith.constant 0 : index
    %1 = vector.load %arg1[%c0_1, %c0_2] : memref<16x128xbf16, #tpu.memory_space<vmem>>, vector<16x128xbf16>
    %2 = arith.truncf %0 : vector<128x16xf32> to vector<128x16xbf16>
    %cst = arith.constant dense<0.000000e+00> : vector<128x128xf32>
    %3 = tpu.matmul %2, %1, %cst {dimension_numbers = #tpu.dot_dimension_numbers<[1], [0], [0], [1], [0, 0, 1, 1], [], []>} : vector<128x16xbf16>, vector<16x128xbf16>, vector<128x128xf32> -> vector<128x128xf32>
    %cst_3 = arith.constant dense<0.000000e+00> : vector<128xf32>
    %4 = vector.multi_reduction <add>, %3, %cst_3 [0] : vector<128x128xf32> to vector<128xf32>
    %5 = vector.shape_cast %4 : vector<128xf32> to vector<1x128xf32>
    %6 = arith.mulf %3, %3 : vector<128x128xf32>
    %cst_4 = arith.constant dense<0.000000e+00> : vector<128xf32>
    %7 = vector.multi_reduction <add>, %6, %cst_4 [0] : vector<128x128xf32> to vector<128xf32>
    %8 = vector.shape_cast %7 : vector<128xf32> to vector<1x128xf32>
    %cst_5 = arith.constant 7.812500e-03 : f32
    %9 = vector.broadcast %cst_5 : f32 to vector<1x128xf32>
    %10 = arith.mulf %5, %9 : vector<1x128xf32>
    %cst_6 = arith.constant 7.812500e-03 : f32
    %11 = vector.broadcast %cst_6 : f32 to vector<1x128xf32>
    %12 = arith.mulf %8, %11 : vector<1x128xf32>
    %13 = arith.mulf %10, %10 : vector<1x128xf32>
    %14 = arith.subf %12, %13 : vector<1x128xf32>
    %cst_7 = arith.constant 0.000000e+00 : f32
    %15 = vector.broadcast %cst_7 : f32 to vector<1x128xf32>
    %16 = arith.maximumf %14, %15 : vector<1x128xf32>
    %c0_8 = arith.constant 0 : index
    %c0_9 = arith.constant 0 : index
    %c0_10 = arith.constant 0 : index
    %17 = vector.load %arg3[%c0_8, %c0_9, %c0_10] : memref<4x2x128xf32, #tpu.memory_space<vmem>>, vector<1x2x128xf32>
    %18 = vector.shape_cast %17 : vector<1x2x128xf32> to vector<2x128xf32>
    %19 = vector.extract_strided_slice %18 {offsets = [0, 0], sizes = [1, 128], strides = [1, 1]} : vector<2x128xf32> to vector<1x128xf32>
    %cst_11 = arith.constant 9.99999974E-6 : f32
    %20 = vector.broadcast %cst_11 : f32 to vector<1x128xf32>
    %21 = arith.addf %16, %20 : vector<1x128xf32>
    %22 = math.rsqrt %21 : vector<1x128xf32>
    %23 = arith.mulf %19, %22 : vector<1x128xf32>
    %24 = vector.extract_strided_slice %18 {offsets = [1, 0], sizes = [1, 128], strides = [1, 1]} : vector<2x128xf32> to vector<1x128xf32>
    %25 = arith.mulf %10, %23 : vector<1x128xf32>
    %26 = arith.subf %24, %25 : vector<1x128xf32>
    %27 = vector.broadcast %23 : vector<1x128xf32> to vector<128x128xf32>
    %28 = arith.mulf %3, %27 : vector<128x128xf32>
    %29 = vector.broadcast %26 : vector<1x128xf32> to vector<128x128xf32>
    %30 = arith.addf %28, %29 : vector<128x128xf32>
    %cst_12 = arith.constant 2.000000e-01 : f32
    %31 = vector.broadcast %cst_12 : f32 to vector<128x128xf32>
    %32 = arith.mulf %31, %30 : vector<128x128xf32>
    %33 = arith.maximumf %30, %32 : vector<128x128xf32>
    %c0_13 = arith.constant 0 : index
    %c0_14 = arith.constant 0 : index
    %c0_15 = arith.constant 0 : index
    %34 = vector.load %arg2[%c0_13, %c0_14, %c0_15] : memref<3x128x128xbf16, #tpu.memory_space<vmem>>, vector<1x128x128xbf16>
    %35 = vector.shape_cast %34 : vector<1x128x128xbf16> to vector<128x128xbf16>
    %36 = arith.truncf %33 : vector<128x128xf32> to vector<128x128xbf16>
    %cst_16 = arith.constant dense<0.000000e+00> : vector<128x128xf32>
    %37 = tpu.matmul %36, %35, %cst_16 {dimension_numbers = #tpu.dot_dimension_numbers<[1], [0], [0], [1], [0, 0, 1, 1], [], []>} : vector<128x128xbf16>, vector<128x128xbf16>, vector<128x128xf32> -> vector<128x128xf32>
    %cst_17 = arith.constant dense<0.000000e+00> : vector<128xf32>
    %38 = vector.multi_reduction <add>, %37, %cst_17 [0] : vector<128x128xf32> to vector<128xf32>
    %39 = vector.shape_cast %38 : vector<128xf32> to vector<1x128xf32>
    %40 = arith.mulf %37, %37 : vector<128x128xf32>
    %cst_18 = arith.constant dense<0.000000e+00> : vector<128xf32>
    %41 = vector.multi_reduction <add>, %40, %cst_18 [0] : vector<128x128xf32> to vector<128xf32>
    %42 = vector.shape_cast %41 : vector<128xf32> to vector<1x128xf32>
    %cst_19 = arith.constant 7.812500e-03 : f32
    %43 = vector.broadcast %cst_19 : f32 to vector<1x128xf32>
    %44 = arith.mulf %39, %43 : vector<1x128xf32>
    %cst_20 = arith.constant 7.812500e-03 : f32
    %45 = vector.broadcast %cst_20 : f32 to vector<1x128xf32>
    %46 = arith.mulf %42, %45 : vector<1x128xf32>
    %47 = arith.mulf %44, %44 : vector<1x128xf32>
    %48 = arith.subf %46, %47 : vector<1x128xf32>
    %cst_21 = arith.constant 0.000000e+00 : f32
    %49 = vector.broadcast %cst_21 : f32 to vector<1x128xf32>
    %50 = arith.maximumf %48, %49 : vector<1x128xf32>
    %c1 = arith.constant 1 : index
    %c0_22 = arith.constant 0 : index
    %c0_23 = arith.constant 0 : index
    %51 = vector.load %arg3[%c1, %c0_22, %c0_23] : memref<4x2x128xf32, #tpu.memory_space<vmem>>, vector<1x2x128xf32>
    %52 = vector.shape_cast %51 : vector<1x2x128xf32> to vector<2x128xf32>
    %53 = vector.extract_strided_slice %52 {offsets = [0, 0], sizes = [1, 128], strides = [1, 1]} : vector<2x128xf32> to vector<1x128xf32>
    %cst_24 = arith.constant 9.99999974E-6 : f32
    %54 = vector.broadcast %cst_24 : f32 to vector<1x128xf32>
    %55 = arith.addf %50, %54 : vector<1x128xf32>
    %56 = math.rsqrt %55 : vector<1x128xf32>
    %57 = arith.mulf %53, %56 : vector<1x128xf32>
    %58 = vector.extract_strided_slice %52 {offsets = [1, 0], sizes = [1, 128], strides = [1, 1]} : vector<2x128xf32> to vector<1x128xf32>
    %59 = arith.mulf %44, %57 : vector<1x128xf32>
    %60 = arith.subf %58, %59 : vector<1x128xf32>
    %61 = vector.broadcast %57 : vector<1x128xf32> to vector<128x128xf32>
    %62 = arith.mulf %37, %61 : vector<128x128xf32>
    %63 = vector.broadcast %60 : vector<1x128xf32> to vector<128x128xf32>
    %64 = arith.addf %62, %63 : vector<128x128xf32>
    %cst_25 = arith.constant 2.000000e-01 : f32
    %65 = vector.broadcast %cst_25 : f32 to vector<128x128xf32>
    %66 = arith.mulf %65, %64 : vector<128x128xf32>
    %67 = arith.maximumf %64, %66 : vector<128x128xf32>
    %c1_26 = arith.constant 1 : index
    %c0_27 = arith.constant 0 : index
    %c0_28 = arith.constant 0 : index
    %68 = vector.load %arg2[%c1_26, %c0_27, %c0_28] : memref<3x128x128xbf16, #tpu.memory_space<vmem>>, vector<1x128x128xbf16>
    %69 = vector.shape_cast %68 : vector<1x128x128xbf16> to vector<128x128xbf16>
    %70 = arith.truncf %67 : vector<128x128xf32> to vector<128x128xbf16>
    %cst_29 = arith.constant dense<0.000000e+00> : vector<128x128xf32>
    %71 = tpu.matmul %70, %69, %cst_29 {dimension_numbers = #tpu.dot_dimension_numbers<[1], [0], [0], [1], [0, 0, 1, 1], [], []>} : vector<128x128xbf16>, vector<128x128xbf16>, vector<128x128xf32> -> vector<128x128xf32>
    %cst_30 = arith.constant dense<0.000000e+00> : vector<128xf32>
    %72 = vector.multi_reduction <add>, %71, %cst_30 [0] : vector<128x128xf32> to vector<128xf32>
    %73 = vector.shape_cast %72 : vector<128xf32> to vector<1x128xf32>
    %74 = arith.mulf %71, %71 : vector<128x128xf32>
    %cst_31 = arith.constant dense<0.000000e+00> : vector<128xf32>
    %75 = vector.multi_reduction <add>, %74, %cst_31 [0] : vector<128x128xf32> to vector<128xf32>
    %76 = vector.shape_cast %75 : vector<128xf32> to vector<1x128xf32>
    %cst_32 = arith.constant 7.812500e-03 : f32
    %77 = vector.broadcast %cst_32 : f32 to vector<1x128xf32>
    %78 = arith.mulf %73, %77 : vector<1x128xf32>
    %cst_33 = arith.constant 7.812500e-03 : f32
    %79 = vector.broadcast %cst_33 : f32 to vector<1x128xf32>
    %80 = arith.mulf %76, %79 : vector<1x128xf32>
    %81 = arith.mulf %78, %78 : vector<1x128xf32>
    %82 = arith.subf %80, %81 : vector<1x128xf32>
    %cst_34 = arith.constant 0.000000e+00 : f32
    %83 = vector.broadcast %cst_34 : f32 to vector<1x128xf32>
    %84 = arith.maximumf %82, %83 : vector<1x128xf32>
    %c2 = arith.constant 2 : index
    %c0_35 = arith.constant 0 : index
    %c0_36 = arith.constant 0 : index
    %85 = vector.load %arg3[%c2, %c0_35, %c0_36] : memref<4x2x128xf32, #tpu.memory_space<vmem>>, vector<1x2x128xf32>
    %86 = vector.shape_cast %85 : vector<1x2x128xf32> to vector<2x128xf32>
    %87 = vector.extract_strided_slice %86 {offsets = [0, 0], sizes = [1, 128], strides = [1, 1]} : vector<2x128xf32> to vector<1x128xf32>
    %cst_37 = arith.constant 9.99999974E-6 : f32
    %88 = vector.broadcast %cst_37 : f32 to vector<1x128xf32>
    %89 = arith.addf %84, %88 : vector<1x128xf32>
    %90 = math.rsqrt %89 : vector<1x128xf32>
    %91 = arith.mulf %87, %90 : vector<1x128xf32>
    %92 = vector.extract_strided_slice %86 {offsets = [1, 0], sizes = [1, 128], strides = [1, 1]} : vector<2x128xf32> to vector<1x128xf32>
    %93 = arith.mulf %78, %91 : vector<1x128xf32>
    %94 = arith.subf %92, %93 : vector<1x128xf32>
    %95 = vector.broadcast %91 : vector<1x128xf32> to vector<128x128xf32>
    %96 = arith.mulf %71, %95 : vector<128x128xf32>
    %97 = vector.broadcast %94 : vector<1x128xf32> to vector<128x128xf32>
    %98 = arith.addf %96, %97 : vector<128x128xf32>
    %99 = arith.addf %98, %33 : vector<128x128xf32>
    %cst_38 = arith.constant 2.000000e-01 : f32
    %100 = vector.broadcast %cst_38 : f32 to vector<128x128xf32>
    %101 = arith.mulf %100, %99 : vector<128x128xf32>
    %102 = arith.maximumf %99, %101 : vector<128x128xf32>
    %c2_39 = arith.constant 2 : index
    %c0_40 = arith.constant 0 : index
    %c0_41 = arith.constant 0 : index
    %103 = vector.load %arg2[%c2_39, %c0_40, %c0_41] : memref<3x128x128xbf16, #tpu.memory_space<vmem>>, vector<1x128x128xbf16>
    %104 = vector.shape_cast %103 : vector<1x128x128xbf16> to vector<128x128xbf16>
    %105 = arith.truncf %102 : vector<128x128xf32> to vector<128x128xbf16>
    %cst_42 = arith.constant dense<0.000000e+00> : vector<128x128xf32>
    %106 = tpu.matmul %105, %104, %cst_42 {dimension_numbers = #tpu.dot_dimension_numbers<[1], [0], [0], [1], [0, 0, 1, 1], [], []>} : vector<128x128xbf16>, vector<128x128xbf16>, vector<128x128xf32> -> vector<128x128xf32>
    %cst_43 = arith.constant dense<0.000000e+00> : vector<128xf32>
    %107 = vector.multi_reduction <add>, %106, %cst_43 [0] : vector<128x128xf32> to vector<128xf32>
    %108 = vector.shape_cast %107 : vector<128xf32> to vector<1x128xf32>
    %109 = arith.mulf %106, %106 : vector<128x128xf32>
    %cst_44 = arith.constant dense<0.000000e+00> : vector<128xf32>
    %110 = vector.multi_reduction <add>, %109, %cst_44 [0] : vector<128x128xf32> to vector<128xf32>
    %111 = vector.shape_cast %110 : vector<128xf32> to vector<1x128xf32>
    %cst_45 = arith.constant 7.812500e-03 : f32
    %112 = vector.broadcast %cst_45 : f32 to vector<1x128xf32>
    %113 = arith.mulf %108, %112 : vector<1x128xf32>
    %cst_46 = arith.constant 7.812500e-03 : f32
    %114 = vector.broadcast %cst_46 : f32 to vector<1x128xf32>
    %115 = arith.mulf %111, %114 : vector<1x128xf32>
    %116 = arith.mulf %113, %113 : vector<1x128xf32>
    %117 = arith.subf %115, %116 : vector<1x128xf32>
    %cst_47 = arith.constant 0.000000e+00 : f32
    %118 = vector.broadcast %cst_47 : f32 to vector<1x128xf32>
    %119 = arith.maximumf %117, %118 : vector<1x128xf32>
    %c3 = arith.constant 3 : index
    %c0_48 = arith.constant 0 : index
    %c0_49 = arith.constant 0 : index
    %120 = vector.load %arg3[%c3, %c0_48, %c0_49] : memref<4x2x128xf32, #tpu.memory_space<vmem>>, vector<1x2x128xf32>
    %121 = vector.shape_cast %120 : vector<1x2x128xf32> to vector<2x128xf32>
    %122 = vector.extract_strided_slice %121 {offsets = [0, 0], sizes = [1, 128], strides = [1, 1]} : vector<2x128xf32> to vector<1x128xf32>
    %cst_50 = arith.constant 9.99999974E-6 : f32
    %123 = vector.broadcast %cst_50 : f32 to vector<1x128xf32>
    %124 = arith.addf %119, %123 : vector<1x128xf32>
    %125 = math.rsqrt %124 : vector<1x128xf32>
    %126 = arith.mulf %122, %125 : vector<1x128xf32>
    %127 = vector.extract_strided_slice %121 {offsets = [1, 0], sizes = [1, 128], strides = [1, 1]} : vector<2x128xf32> to vector<1x128xf32>
    %128 = arith.mulf %113, %126 : vector<1x128xf32>
    %129 = arith.subf %127, %128 : vector<1x128xf32>
    %130 = vector.broadcast %126 : vector<1x128xf32> to vector<128x128xf32>
    %131 = arith.mulf %106, %130 : vector<128x128xf32>
    %132 = vector.broadcast %129 : vector<1x128xf32> to vector<128x128xf32>
    %133 = arith.addf %131, %132 : vector<128x128xf32>
    %c0_51 = arith.constant 0 : index
    %c0_52 = arith.constant 0 : index
    %134 = vector.load %arg4[%c0_51, %c0_52] : memref<128x128xf32, #tpu.memory_space<vmem>>, vector<128x128xf32>
    tpu.vector_store %arg4[%c0_51, %c0_52], %133 {strides = array<i32>} : memref<128x128xf32, #tpu.memory_space<vmem>>, vector<128x128xf32>,
    return
  }
}

</mosaic_0001>

<llo_original>
// kernel: tpu_custom_call.1
$region0: #{tpu_custom_call.1}
  #allocation0 [shape = 'u32[]', space=smem, size = 0x4, offset = 0x4, fixed_abs, tag = 'smem constant byte address 0x4 - core index']
  #allocation1 [shape = 'u32[144,128]{1,0:T(1,128)}', space=vmem, size = 0x12000, scoped, tag = 'internal scratch']
  %s0 = inlined_call_operand.vmem [shape: f32[128,16], index: 0, kind: input, shape index: {}]
  %s1 = inlined_call_operand.vmem [shape: bf16[16,128], index: 1, kind: input, shape index: {}]
  %s2 = inlined_call_operand.hbm [shape: bf16[3,128,128], index: 2, kind: input, shape index: {}]
  %s3 = inlined_call_operand.vmem [shape: f32[4,2,128], index: 3, kind: input, shape index: {}]
  %s4 = inlined_call_operand.hbm [shape: f32[128,128], index: 4, kind: output, shape index: {}]
  %s5 = sld [smem:[#allocation0]]
  $region30: #{tpu_custom_call.1} parent=0
    _
  %s7 = ssub.s32 1, %s5
  %s8 = scalar_select 0, %s7, %s5
  $region1: #{tpu_custom_call.1} parent=0
    #allocation2 [shape = 'u8[98304]{0}', space=vmem, size = 0x18000, scoped, tag = 'input window, operand 2, single buffered']
    #allocation3 [shape = 's32[1]{0}', space=sflag, size = 0x4, scoped, tag = 'scoped memory for tpu_custom_call.1']
    #allocation4 [shape = 's32[1]{0}', space=sflag, size = 0x4, scoped, tag = 'scoped memory for tpu_custom_call.1']
    #allocation5 [shape = 'u8[65536]{0}', space=vmem, size = 0x10000, scoped, tag = 'output window, operand 0, single buffered']
    %9 = vsyncpa [#allocation3], 0
    %10 = vsyncpa [#allocation4], 0
    // Predicated region
    $region2: #{tpu_custom_call.1} parent=1 // pred_check
      _
    $region3: #{tpu_custom_call.1} parent=1 // pred_check_branch
      %12 = sbr.rel (0) target = $region5
    $region4: #{tpu_custom_call.1} parent=1 // pred_region
      _
    $region5: #{tpu_custom_call.1} parent=1 // pred_fallthru
      _
    // Predicated region
    $region6: #{tpu_custom_call.1} parent=1 // pred_check
      _
    $region7: #{tpu_custom_call.1} parent=1 // pred_check_branch
      %14 = sbr.rel (0) target = $region9
    $region8: #{tpu_custom_call.1} parent=1 // pred_region
      _
    $region9: #{tpu_custom_call.1} parent=1 // pred_fallthru
      _
    // Predicated region
    $region10: #{tpu_custom_call.1} parent=1 // pred_check
      _
    $region11: #{tpu_custom_call.1} parent=1 // pred_check_branch
      %16 = sbr.rel (0) target = $region13
    $region12: #{tpu_custom_call.1} parent=1 // pred_region
      %s18 = ssub.s32 3072, 3072
      %19 = vsyncadd [#allocation3], %s18
      %s20 = sshll.u32 [#allocation2], 4
      %s21 = int_to_ptr.vmem [resolvable:$true] %s20
      %26 = dma.hbm_to_vmem [thread:$0]  %s2, 3072, %s21, [#allocation3], 64, 64, 4
    $region13: #{tpu_custom_call.1} parent=1 // pred_fallthru
      _
    // Predicated region
    $region14: #{tpu_custom_call.1} parent=1 // pred_check
      _
    $region15: #{tpu_custom_call.1} parent=1 // pred_check_branch
      %28 = sbr.rel (0) target = $region17
    $region16: #{tpu_custom_call.1} parent=1 // pred_region
      _
    $region17: #{tpu_custom_call.1} parent=1 // pred_fallthru
      _
    // Predicated region
    $region18: #{tpu_custom_call.1} parent=1 // pred_check
      _
    $region19: #{tpu_custom_call.1} parent=1 // pred_check_branch
      %30 = sbr.rel (0) target = $region21
    $region20: #{tpu_custom_call.1} parent=1 // pred_region
      %31 = dma.done [#allocation3], 3072
    $region21: #{tpu_custom_call.1} parent=1 // pred_fallthru
      _
    %v33 = vld [vmem:[%s0] sm:$0xff]
    %v34 = vld [vmem:[%s0 + $0x8] sm:$0xff]
    %v35 = vld [vmem:[%s0 + $0x10] sm:$0xff]
    %v36 = vld [vmem:[%s0 + $0x18] sm:$0xff]
    %v37 = vld [vmem:[%s0 + $0x20] sm:$0xff]
    %v38 = vld [vmem:[%s0 + $0x28] sm:$0xff]
    %v39 = vld [vmem:[%s0 + $0x30] sm:$0xff]
    %v40 = vld [vmem:[%s0 + $0x38] sm:$0xff]
    %v41 = vld [vmem:[%s0 + $0x40] sm:$0xff]
    %v42 = vld [vmem:[%s0 + $0x48] sm:$0xff]
    %v43 = vld [vmem:[%s0 + $0x50] sm:$0xff]
    %v44 = vld [vmem:[%s0 + $0x58] sm:$0xff]
    %v45 = vld [vmem:[%s0 + $0x60] sm:$0xff]
    %v46 = vld [vmem:[%s0 + $0x68] sm:$0xff]
    %v47 = vld [vmem:[%s0 + $0x70] sm:$0xff]
    %v48 = vld [vmem:[%s0 + $0x78] sm:$0xff]
    %v49 = vld [vmem:[%s1] sm:$0xf]
    %v50 = vld [vmem:[%s1 + $0x4] sm:$0xf]
    %v51 = vpack.c.bf16 %v34, %v33
    %v52 = vpack.c.bf16 %v36, %v35
    %v53 = vpack.c.bf16 %v38, %v37
    %v54 = vpack.c.bf16 %v40, %v39
    %v55 = vpack.c.bf16 %v42, %v41
    %v56 = vpack.c.bf16 %v44, %v43
    %v57 = vpack.c.bf16 %v46, %v45
    %v58 = vpack.c.bf16 %v48, %v47
    %v61 = vunpack.c.l.b16 %v49
    %v62 = vunpack.c.l.b16 %v50
    %v63 = vpack.c.b16 %v62, %v61
    %vm65 = vcmask 130048
    %v67 = vsel %vm65, %v51, 0
    %v70 = vsel %vm65, %v52, 0
    %v73 = vsel %vm65, %v53, 0
    %v76 = vsel %vm65, %v54, 0
    %v79 = vsel %vm65, %v55, 0
    %v82 = vsel %vm65, %v56, 0
    %v85 = vsel %vm65, %v57, 0
    %v88 = vsel %vm65, %v58, 0
    %90 = vmatprep.subr.bf16.mxu0 0
    %91 = vmatpush1.bf16.msra.mxu0 %v63
    %92 = vmatprep.subr.bf16.mxu0 0
    %93 = vmatpush1.bf16.msra.mxu0 0
    %94 = vmatprep.subr.bf16.mxu0 0
    %95 = vmatpush1.bf16.msra.mxu0 0
    %96 = vmatprep.subr.bf16.mxu0 0
    %97 = vmatpush1.bf16.msra.mxu0 0
    %98 = vmatprep.subr.bf16.mxu0 0
    %99 = vmatpush1.bf16.msra.mxu0 0
    %100 = vmatprep.subr.bf16.mxu0 0
    %101 = vmatpush1.bf16.msra.mxu0 0
    %102 = vmatprep.subr.bf16.mxu0 0
    %103 = vmatpush1.bf16.msra.mxu0 0
    %104 = vmatprep.subr.bf16.mxu0 0
    %105 = vmatpush1.bf16.msra.mxu0 0
    %106 = vmatprep.subr.bf16.mxu0 0
    %107 = vmatpush1.bf16.msra.mxu0 0
    %108 = vmatprep.subr.bf16.mxu0 0
    %109 = vmatpush1.bf16.msra.mxu0 0
    %110 = vmatprep.subr.bf16.mxu0 0
    %111 = vmatpush1.bf16.msra.mxu0 0
    %112 = vmatprep.subr.bf16.mxu0 0
    %113 = vmatpush1.bf16.msra.mxu0 0
    %114 = vmatprep.subr.bf16.mxu0 0
    %115 = vmatpush1.bf16.msra.mxu0 0
    %116 = vmatprep.subr.bf16.mxu0 0
    %117 = vmatpush1.bf16.msra.mxu0 0
    %118 = vmatprep.subr.bf16.mxu0 0
    %119 = vmatpush1.bf16.msra.mxu0 0
    %120 = vmatprep.subr.bf16.mxu0 0
    %121 = vmatpush1.bf16.msra.mxu0 0
    %122 = vmatprep.mubr.bf16.mxu0 0
    %123 = vmatmul.mubr.bf16.gmra.mrb[0].mxu0 %v67
    %v124 = vpop.f32.mrb[0].mxu0
    %v125 = vadd.f32 0.0, %v124
    %v126 = vpop.f32.mrb[0].mxu0
    %v127 = vpop.f32.mrb[0].mxu0
    %v128 = vadd.f32 0.0, %v127
    %v129 = vpop.f32.mrb[0].mxu0
    %130 = vmatprep.mubr.bf16.mxu0 0
    %131 = vmatmul.mubr.bf16.gmra.mrb[0].mxu0 %v70
    %v132 = vpop.f32.mrb[0].mxu0
    %v133 = vadd.f32 0.0, %v132
    %v134 = vpop.f32.mrb[0].mxu0
    %v135 = vpop.f32.mrb[0].mxu0
    %v136 = vadd.f32 0.0, %v135
    %v137 = vpop.f32.mrb[0].mxu0
    %138 = vmatprep.mubr.bf16.mxu0 0
    %139 = vmatmul.mubr.bf16.gmra.mrb[0].mxu0 %v73
    %v140 = vpop.f32.mrb[0].mxu0
    %v141 = vadd.f32 0.0, %v140
    %v142 = vpop.f32.mrb[0].mxu0
    %v143 = vpop.f32.mrb[0].mxu0
    %v144 = vadd.f32 0.0, %v143
    %v145 = vpop.f32.mrb[0].mxu0
    %146 = vmatprep.mubr.bf16.mxu0 0
    %147 = vmatmul.mubr.bf16.gmra.mrb[0].mxu0 %v76
    %v148 = vpop.f32.mrb[0].mxu0
    %v149 = vadd.f32 0.0, %v148
    %v150 = vpop.f32.mrb[0].mxu0
    %v151 = vpop.f32.mrb[0].mxu0
    %v152 = vadd.f32 0.0, %v151
    %v153 = vpop.f32.mrb[0].mxu0
    %154 = vmatprep.mubr.bf16.mxu0 0
    %155 = vmatmul.mubr.bf16.gmra.mrb[0].mxu0 %v79
    %v156 = vpop.f32.mrb[0].mxu0
    %v157 = vadd.f32 0.0, %v156
    %v158 = vpop.f32.mrb[0].mxu0
    %v159 = vpop.f32.mrb[0].mxu0
    %v160 = vadd.f32 0.0, %v159
    %v161 = vpop.f32.mrb[0].mxu0
    %162 = vmatprep.mubr.bf16.mxu0 0
    %163 = vmatmul.mubr.bf16.gmra.mrb[0].mxu0 %v82
    %v164 = vpop.f32.mrb[0].mxu0
    %v165 = vadd.f32 0.0, %v164
    %v166 = vpop.f32.mrb[0].mxu0
    %v167 = vpop.f32.mrb[0].mxu0
    %v168 = vadd.f32 0.0, %v167
    %v169 = vpop.f32.mrb[0].mxu0
    %170 = vmatprep.mubr.bf16.mxu0 0
    %171 = vmatmul.mubr.bf16.gmra.mrb[0].mxu0 %v85
    %v172 = vpop.f32.mrb[0].mxu0
    %v173 = vadd.f32 0.0, %v172
    %v174 = vpop.f32.mrb[0].mxu0
    %v175 = vpop.f32.mrb[0].mxu0
    %v176 = vadd.f32 0.0, %v175
    %v177 = vpop.f32.mrb[0].mxu0
    %178 = vmatprep.mubr.bf16.mxu0 0
    %179 = vmatmul.mubr.bf16.gmra.mrb[0].mxu0 %v88
    %v180 = vpop.f32.mrb[0].mxu0
    %v181 = vadd.f32 0.0, %v180
    %v182 = vpop.f32.mrb[0].mxu0
    %v183 = vpop.f32.mrb[0].mxu0
    %v184 = vadd.f32 0.0, %v183
    %v185 = vpop.f32.mrb[0].mxu0
    %186 = vdwg.mxu0
    %v187 = vadd.f32 %v125, %v128
    %v188 = vadd.f32 %v187, %v133
    %v189 = vadd.f32 %v188, %v136
    %v190 = vadd.f32 %v189, %v141
    %v191 = vadd.f32 %v190, %v144
    %v192 = vadd.f32 %v191, %v149
    %v193 = vadd.f32 %v192, %v152
    %v194 = vadd.f32 %v193, %v157
    %v195 = vadd.f32 %v194, %v160
    %v196 = vadd.f32 %v195, %v165
    %v197 = vadd.f32 %v196, %v168
    %v198 = vadd.f32 %v197, %v173
    %v199 = vadd.f32 %v198, %v176
    %v200 = vadd.f32 %v199, %v181
    %v201 = vadd.f32 %v200, %v184
    %v202 = vrot.slane %v201, 4
    %v203 = vadd.f32 %v201, %v202
    %v204 = vrot.slane %v203, 2
    %v205 = vadd.f32 %v203, %v204
    %v206 = vrot.slane %v205, 1
    %v207 = vadd.f32 %v205, %v206
    %v208 = vmul.f32 %v125, %v125
    %v209 = vmul.f32 %v128, %v128
    %v210 = vmul.f32 %v133, %v133
    %v211 = vmul.f32 %v136, %v136
    %v212 = vmul.f32 %v141, %v141
    %v213 = vmul.f32 %v144, %v144
    %v214 = vmul.f32 %v149, %v149
    %v215 = vmul.f32 %v152, %v152
    %v216 = vmul.f32 %v157, %v157
    %v217 = vmul.f32 %v160, %v160
    %v218 = vmul.f32 %v165, %v165
    %v219 = vmul.f32 %v168, %v168
    %v220 = vmul.f32 %v173, %v173
    %v221 = vmul.f32 %v176, %v176
    %v222 = vmul.f32 %v181, %v181
    %v223 = vmul.f32 %v184, %v184
    %v224 = vadd.f32 %v208, %v209
    %v225 = vadd.f32 %v224, %v210
    %v226 = vadd.f32 %v225, %v211
    %v227 = vadd.f32 %v226, %v212
    %v228 = vadd.f32 %v227, %v213
    %v229 = vadd.f32 %v228, %v214
    %v230 = vadd.f32 %v229, %v215
    %v231 = vadd.f32 %v230, %v216
    %v232 = vadd.f32 %v231, %v217
    %v233 = vadd.f32 %v232, %v218
    %v234 = vadd.f32 %v233, %v219
    %v235 = vadd.f32 %v234, %v220
    %v236 = vadd.f32 %v235, %v221
    %v237 = vadd.f32 %v236, %v222
    %v238 = vadd.f32 %v237, %v223
    %v239 = vrot.slane %v238, 4
    %v240 = vadd.f32 %v238, %v239
    %v241 = vrot.slane %v240, 2
    %v242 = vadd.f32 %v240, %v241
    %v243 = vrot.slane %v242, 1
    %v244 = vadd.f32 %v242, %v243
    %v245 = vmul.f32 %v207, 0.0078125
    %v246 = vmul.f32 %v244, 0.0078125
    %v247 = vmul.f32 %v245, %v245
    %v248 = vsub.f32 %v246, %v247
    %v249 = vmax.f32 %v248, 0.0
    %v250 = vld [vmem:[%s3] sm:$0x3]
    %v251 = vadd.f32 %v249, 1e-05
    %v252 = vrsqrt.pop %v251
    %v253 = vmul.f32 %v250, %v252
    %v254 = vmul.f32 %v245, %v253
    %v256 = vrot.slane %v254, 7
    %v258 = vsub.f32 %v250, %v256
    %v259 = vlaneseq
    %v260 = vshrl.u32 %v259, 7
    %v261 = vsub.s32 0, %v260
    %v262 = vrot.slane %v253, %v261
    %v263 = vmul.f32 %v125, %v262
    %v264 = vmul.f32 %v128, %v262
    %v265 = vmul.f32 %v133, %v262
    %v266 = vmul.f32 %v136, %v262
    %v267 = vmul.f32 %v141, %v262
    %v268 = vmul.f32 %v144, %v262
    %v269 = vmul.f32 %v149, %v262
    %v270 = vmul.f32 %v152, %v262
    %v271 = vmul.f32 %v157, %v262
    %v272 = vmul.f32 %v160, %v262
    %v273 = vmul.f32 %v165, %v262
    %v274 = vmul.f32 %v168, %v262
    %v275 = vmul.f32 %v173, %v262
    %v276 = vmul.f32 %v176, %v262
    %v277 = vmul.f32 %v181, %v262
    %v278 = vmul.f32 %v184, %v262
    %v279 = vlaneseq
    %v280 = vshrl.u32 %v279, 7
    %v281 = vsub.s32 1, %v280
    %v282 = vrot.slane %v258, %v281
    %v283 = vadd.f32 %v263, %v282
    %v284 = vadd.f32 %v264, %v282
    %v285 = vadd.f32 %v265, %v282
    %v286 = vadd.f32 %v266, %v282
    %v287 = vadd.f32 %v267, %v282
    %v288 = vadd.f32 %v268, %v282
    %v289 = vadd.f32 %v269, %v282
    %v290 = vadd.f32 %v270, %v282
    %v291 = vadd.f32 %v271, %v282
    %v292 = vadd.f32 %v272, %v282
    %v293 = vadd.f32 %v273, %v282
    %v294 = vadd.f32 %v274, %v282
    %v295 = vadd.f32 %v275, %v282
    %v296 = vadd.f32 %v276, %v282
    %v297 = vadd.f32 %v277, %v282
    %v298 = vadd.f32 %v278, %v282
    %v299 = vmul.f32 %v283, 0.2
    %v300 = vmul.f32 %v284, 0.2
    %v301 = vmul.f32 %v285, 0.2
    %v302 = vmul.f32 %v286, 0.2
    %v303 = vmul.f32 %v287, 0.2
    %v304 = vmul.f32 %v288, 0.2
    %v305 = vmul.f32 %v289, 0.2
    %v306 = vmul.f32 %v290, 0.2
    %v307 = vmul.f32 %v291, 0.2
    %v308 = vmul.f32 %v292, 0.2
    %v309 = vmul.f32 %v293, 0.2
    %v310 = vmul.f32 %v294, 0.2
    %v311 = vmul.f32 %v295, 0.2
    %v312 = vmul.f32 %v296, 0.2
    %v313 = vmul.f32 %v297, 0.2
    %v314 = vmul.f32 %v298, 0.2
    %v315 = vmax.f32 %v283, %v299
    %v316 = vmax.f32 %v284, %v300
    %v317 = vmax.f32 %v285, %v301
    %v318 = vmax.f32 %v286, %v302
    %v319 = vmax.f32 %v287, %v303
    %v320 = vmax.f32 %v288, %v304
    %v321 = vmax.f32 %v289, %v305
    %v322 = vmax.f32 %v290, %v306
    %v323 = vmax.f32 %v291, %v307
    %v324 = vmax.f32 %v292, %v308
    %v325 = vmax.f32 %v293, %v309
    %v326 = vmax.f32 %v294, %v310
    %v327 = vmax.f32 %v295, %v311
    %v328 = vmax.f32 %v296, %v312
    %v329 = vmax.f32 %v297, %v313
    %v330 = vmax.f32 %v298, %v314
    %v331 = vld [vmem:[#allocation2] sm:$0xf]
    %v332 = vld [vmem:[#allocation2 + $0x4] sm:$0xf]
    %v333 = vld [vmem:[#allocation2 + $0x8] sm:$0xf]
    %v334 = vld [vmem:[#allocation2 + $0xc] sm:$0xf]
    %v335 = vld [vmem:[#allocation2 + $0x10] sm:$0xf]
    %v336 = vld [vmem:[#allocation2 + $0x14] sm:$0xf]
    %v337 = vld [vmem:[#allocation2 + $0x18] sm:$0xf]
    %v338 = vld [vmem:[#allocation2 + $0x1c] sm:$0xf]
    %v339 = vld [vmem:[#allocation2 + $0x20] sm:$0xf]
    %v340 = vld [vmem:[#allocation2 + $0x24] sm:$0xf]
    %v341 = vld [vmem:[#allocation2 + $0x28] sm:$0xf]
    %v342 = vld [vmem:[#allocation2 + $0x2c] sm:$0xf]
    %v343 = vld [vmem:[#allocation2 + $0x30] sm:$0xf]
    %v344 = vld [vmem:[#allocation2 + $0x34] sm:$0xf]
    %v345 = vld [vmem:[#allocation2 + $0x38] sm:$0xf]
    %v346 = vld [vmem:[#allocation2 + $0x3c] sm:$0xf]
    %v347 = vpack.c.bf16 %v316, %v315
    %v348 = vpack.c.bf16 %v318, %v317
    %v349 = vpack.c.bf16 %v320, %v319
    %v350 = vpack.c.bf16 %v322, %v321
    %v351 = vpack.c.bf16 %v324, %v323
    %v352 = vpack.c.bf16 %v326, %v325
    %v353 = vpack.c.bf16 %v328, %v327
    %v354 = vpack.c.bf16 %v330, %v329
    %v371 = vunpack.c.l.b16 %v331
    %v372 = vunpack.c.l.b16 %v332
    %v373 = vunpack.c.l.b16 %v333
    %v374 = vunpack.c.l.b16 %v334
    %v375 = vunpack.c.l.b16 %v335
    %v376 = vunpack.c.l.b16 %v336
    %v377 = vunpack.c.l.b16 %v337
    %v378 = vunpack.c.l.b16 %v338
    %v379 = vunpack.c.l.b16 %v339
    %v380 = vunpack.c.l.b16 %v340
    %v381 = vunpack.c.l.b16 %v341
    %v382 = vunpack.c.l.b16 %v342
    %v383 = vunpack.c.l.b16 %v343
    %v384 = vunpack.c.l.b16 %v344
    %v385 = vunpack.c.l.b16 %v345
    %v386 = vunpack.c.l.b16 %v346
    %v387 = vpack.c.b16 %v372, %v371
    %v388 = vpack.c.b16 %v374, %v373
    %v389 = vpack.c.b16 %v376, %v375
    %v390 = vpack.c.b16 %v378, %v377
    %v391 = vpack.c.b16 %v380, %v379
    %v392 = vpack.c.b16 %v382, %v381
    %v393 = vpack.c.b16 %v384, %v383
    %v394 = vpack.c.b16 %v386, %v385
    %403 = vmatprep.subr.bf16.mxu0 0
    %404 = vmatpush1.bf16.msra.mxu0 %v387
    %405 = vmatprep.subr.bf16.mxu0 0
    %406 = vmatpush1.bf16.msra.mxu0 %v388
    %407 = vmatprep.subr.bf16.mxu0 0
    %408 = vmatpush1.bf16.msra.mxu0 %v389
    %409 = vmatprep.subr.bf16.mxu0 0
    %410 = vmatpush1.bf16.msra.mxu0 %v390
    %411 = vmatprep.subr.bf16.mxu0 0
    %412 = vmatpush1.bf16.msra.mxu0 %v391
    %413 = vmatprep.subr.bf16.mxu0 0
    %414 = vmatpush1.bf16.msra.mxu0 %v392
    %415 = vmatprep.subr.bf16.mxu0 0
    %416 = vmatpush1.bf16.msra.mxu0 %v393
    %417 = vmatprep.subr.bf16.mxu0 0
    %418 = vmatpush1.bf16.msra.mxu0 %v394
    %419 = vmatprep.subr.bf16.mxu0 0
    %420 = vmatpush1.bf16.msra.mxu0 0
    %421 = vmatprep.subr.bf16.mxu0 0
    %422 = vmatpush1.bf16.msra.mxu0 0
    %423 = vmatprep.subr.bf16.mxu0 0
    %424 = vmatpush1.bf16.msra.mxu0 0
    %425 = vmatprep.subr.bf16.mxu0 0
    %426 = vmatpush1.bf16.msra.mxu0 0
    %427 = vmatprep.subr.bf16.mxu0 0
    %428 = vmatpush1.bf16.msra.mxu0 0
    %429 = vmatprep.subr.bf16.mxu0 0
    %430 = vmatpush1.bf16.msra.mxu0 0
    %431 = vmatprep.subr.bf16.mxu0 0
    %432 = vmatpush1.bf16.msra.mxu0 0
    %433 = vmatprep.subr.bf16.mxu0 0
    %434 = vmatpush1.bf16.msra.mxu0 0
    %435 = vmatprep.mubr.bf16.mxu0 0
    %436 = vmatmul.mubr.bf16.gmra.mrb[0].mxu0 %v347
    %v437 = vpop.f32.mrb[0].mxu0
    %v438 = vadd.f32 0.0, %v437
    %v439 = vpop.f32.mrb[0].mxu0
    %v440 = vpop.f32.mrb[0].mxu0
    %v441 = vadd.f32 0.0, %v440
    %v442 = vpop.f32.mrb[0].mxu0
    %443 = vmatprep.mubr.bf16.mxu0 0
    %444 = vmatmul.mubr.bf16.gmra.mrb[0].mxu0 %v348
    %v445 = vpop.f32.mrb[0].mxu0
    %v446 = vadd.f32 0.0, %v445
    %v447 = vpop.f32.mrb[0].mxu0
    %v448 = vpop.f32.mrb[0].mxu0
    %v449 = vadd.f32 0.0, %v448
    %v450 = vpop.f32.mrb[0].mxu0
    %451 = vmatprep.mubr.bf16.mxu0 0
    %452 = vmatmul.mubr.bf16.gmra.mrb[0].mxu0 %v349
    %v453 = vpop.f32.mrb[0].mxu0
    %v454 = vadd.f32 0.0, %v453
    %v455 = vpop.f32.mrb[0].mxu0
    %v456 = vpop.f32.mrb[0].mxu0
    %v457 = vadd.f32 0.0, %v456
    %v458 = vpop.f32.mrb[0].mxu0
    %459 = vmatprep.mubr.bf16.mxu0 0
    %460 = vmatmul.mubr.bf16.gmra.mrb[0].mxu0 %v350
    %v461 = vpop.f32.mrb[0].mxu0
    %v462 = vadd.f32 0.0, %v461
    %v463 = vpop.f32.mrb[0].mxu0
    %v464 = vpop.f32.mrb[0].mxu0
    %v465 = vadd.f32 0.0, %v464
    %v466 = vpop.f32.mrb[0].mxu0
    %467 = vmatprep.mubr.bf16.mxu0 0
    %468 = vmatmul.mubr.bf16.gmra.mrb[0].mxu0 %v351
    %v469 = vpop.f32.mrb[0].mxu0
    %v470 = vadd.f32 0.0, %v469
    %v471 = vpop.f32.mrb[0].mxu0
    %v472 = vpop.f32.mrb[0].mxu0
    %v473 = vadd.f32 0.0, %v472
    %v474 = vpop.f32.mrb[0].mxu0
    %475 = vmatprep.mubr.bf16.mxu0 0
    %476 = vmatmul.mubr.bf16.gmra.mrb[0].mxu0 %v352
    %v477 = vpop.f32.mrb[0].mxu0
    %v478 = vadd.f32 0.0, %v477
    %v479 = vpop.f32.mrb[0].mxu0
    %v480 = vpop.f32.mrb[0].mxu0
    %v481 = vadd.f32 0.0, %v480
    %v482 = vpop.f32.mrb[0].mxu0
    %483 = vmatprep.mubr.bf16.mxu0 0
    %484 = vmatmul.mubr.bf16.gmra.mrb[0].mxu0 %v353
    %v485 = vpop.f32.mrb[0].mxu0
    %v486 = vadd.f32 0.0, %v485
    %v487 = vpop.f32.mrb[0].mxu0
    %v488 = vpop.f32.mrb[0].mxu0
    %v489 = vadd.f32 0.0, %v488
    %v490 = vpop.f32.mrb[0].mxu0
    %491 = vmatprep.mubr.bf16.mxu0 0
    %492 = vmatmul.mubr.bf16.gmra.mrb[0].mxu0 %v354
    %v493 = vpop.f32.mrb[0].mxu0
    %v494 = vadd.f32 0.0, %v493
    %v495 = vpop.f32.mrb[0].mxu0
    %v496 = vpop.f32.mrb[0].mxu0
    %v497 = vadd.f32 0.0, %v496
    %v498 = vpop.f32.mrb[0].mxu0
    %499 = vdwg.mxu0
    %v500 = vadd.f32 %v438, %v441
    %v501 = vadd.f32 %v500, %v446
    %v502 = vadd.f32 %v501, %v449
    %v503 = vadd.f32 %v502, %v454
    %v504 = vadd.f32 %v503, %v457
    %v505 = vadd.f32 %v504, %v462
    %v506 = vadd.f32 %v505, %v465
    %v507 = vadd.f32 %v506, %v470
    %v508 = vadd.f32 %v507, %v473
    %v509 = vadd.f32 %v508, %v478
    %v510 = vadd.f32 %v509, %v481
    %v511 = vadd.f32 %v510, %v486
    %v512 = vadd.f32 %v511, %v489
    %v513 = vadd.f32 %v512, %v494
    %v514 = vadd.f32 %v513, %v497
    %v515 = vrot.slane %v514, 4
    %v516 = vadd.f32 %v514, %v515
    %v517 = vrot.slane %v516, 2
    %v518 = vadd.f32 %v516, %v517
    %v519 = vrot.slane %v518, 1
    %v520 = vadd.f32 %v518, %v519
    %v521 = vmul.f32 %v438, %v438
    %v522 = vmul.f32 %v441, %v441
    %v523 = vmul.f32 %v446, %v446
    %v524 = vmul.f32 %v449, %v449
    %v525 = vmul.f32 %v454, %v454
    %v526 = vmul.f32 %v457, %v457
    %v527 = vmul.f32 %v462, %v462
    %v528 = vmul.f32 %v465, %v465
    %v529 = vmul.f32 %v470, %v470
    %v530 = vmul.f32 %v473, %v473
    %v531 = vmul.f32 %v478, %v478
    %v532 = vmul.f32 %v481, %v481
    %v533 = vmul.f32 %v486, %v486
    %v534 = vmul.f32 %v489, %v489
    %v535 = vmul.f32 %v494, %v494
    %v536 = vmul.f32 %v497, %v497
    %v537 = vadd.f32 %v521, %v522
    %v538 = vadd.f32 %v537, %v523
    %v539 = vadd.f32 %v538, %v524
    %v540 = vadd.f32 %v539, %v525
    %v541 = vadd.f32 %v540, %v526
    %v542 = vadd.f32 %v541, %v527
    %v543 = vadd.f32 %v542, %v528
    %v544 = vadd.f32 %v543, %v529
    %v545 = vadd.f32 %v544, %v530
    %v546 = vadd.f32 %v545, %v531
    %v547 = vadd.f32 %v546, %v532
    %v548 = vadd.f32 %v547, %v533
    %v549 = vadd.f32 %v548, %v534
    %v550 = vadd.f32 %v549, %v535
    %v551 = vadd.f32 %v550, %v536
    %v552 = vrot.slane %v551, 4
    %v553 = vadd.f32 %v551, %v552
    %v554 = vrot.slane %v553, 2
    %v555 = vadd.f32 %v553, %v554
    %v556 = vrot.slane %v555, 1
    %v557 = vadd.f32 %v555, %v556
    %v558 = vmul.f32 %v520, 0.0078125
    %v559 = vmul.f32 %v557, 0.0078125
    %v560 = vmul.f32 %v558, %v558
    %v561 = vsub.f32 %v559, %v560
    %v562 = vmax.f32 %v561, 0.0
    %s563 = scalar_lea.vmem %s3, 2
    %v564 = vld [vmem:[%s563] sm:$0x3]
    %v565 = vadd.f32 %v562, 1e-05
    %v566 = vrsqrt.pop %v565
    %v567 = vmul.f32 %v564, %v566
    %v568 = vmul.f32 %v558, %v567
    %v570 = vrot.slane %v568, 7
    %v572 = vsub.f32 %v564, %v570
    %v573 = vlaneseq
    %v574 = vshrl.u32 %v573, 7
    %v575 = vsub.s32 0, %v574
    %v576 = vrot.slane %v567, %v575
    %v577 = vmul.f32 %v438, %v576
    %v578 = vmul.f32 %v441, %v576
    %v579 = vmul.f32 %v446, %v576
    %v580 = vmul.f32 %v449, %v576
    %v581 = vmul.f32 %v454, %v576
    %v582 = vmul.f32 %v457, %v576
    %v583 = vmul.f32 %v462, %v576
    %v584 = vmul.f32 %v465, %v576
    %v585 = vmul.f32 %v470, %v576
    %v586 = vmul.f32 %v473, %v576
    %v587 = vmul.f32 %v478, %v576
    %v588 = vmul.f32 %v481, %v576
    %v589 = vmul.f32 %v486, %v576
    %v590 = vmul.f32 %v489, %v576
    %v591 = vmul.f32 %v494, %v576
    %v592 = vmul.f32 %v497, %v576
    %v593 = vlaneseq
    %v594 = vshrl.u32 %v593, 7
    %v595 = vsub.s32 1, %v594
    %v596 = vrot.slane %v572, %v595
    %v597 = vadd.f32 %v577, %v596
    %v598 = vadd.f32 %v578, %v596
    %v599 = vadd.f32 %v579, %v596
    %v600 = vadd.f32 %v580, %v596
    %v601 = vadd.f32 %v581, %v596
    %v602 = vadd.f32 %v582, %v596
    %v603 = vadd.f32 %v583, %v596
    %v604 = vadd.f32 %v584, %v596
    %v605 = vadd.f32 %v585, %v596
    %v606 = vadd.f32 %v586, %v596
    %v607 = vadd.f32 %v587, %v596
    %v608 = vadd.f32 %v588, %v596
    %v609 = vadd.f32 %v589, %v596
    %v610 = vadd.f32 %v590, %v596
    %v611 = vadd.f32 %v591, %v596
    %v612 = vadd.f32 %v592, %v596
    %v613 = vmul.f32 %v597, 0.2
    %v614 = vmul.f32 %v598, 0.2
    %v615 = vmul.f32 %v599, 0.2
    %v616 = vmul.f32 %v600, 0.2
    %v617 = vmul.f32 %v601, 0.2
    %v618 = vmul.f32 %v602, 0.2
    %v619 = vmul.f32 %v603, 0.2
    %v620 = vmul.f32 %v604, 0.2
    %v621 = vmul.f32 %v605, 0.2
    %v622 = vmul.f32 %v606, 0.2
    %v623 = vmul.f32 %v607, 0.2
    %v624 = vmul.f32 %v608, 0.2
    %v625 = vmul.f32 %v609, 0.2
    %v626 = vmul.f32 %v610, 0.2
    %v627 = vmul.f32 %v611, 0.2
    %v628 = vmul.f32 %v612, 0.2
    %v629 = vmax.f32 %v597, %v613
    %v630 = vmax.f32 %v598, %v614
    %v631 = vmax.f32 %v599, %v615
    %v632 = vmax.f32 %v600, %v616
    %v633 = vmax.f32 %v601, %v617
    %v634 = vmax.f32 %v602, %v618
    %v635 = vmax.f32 %v603, %v619
    %v636 = vmax.f32 %v604, %v620
    %v637 = vmax.f32 %v605, %v621
    %v638 = vmax.f32 %v606, %v622
    %v639 = vmax.f32 %v607, %v623
    %v640 = vmax.f32 %v608, %v624
    %v641 = vmax.f32 %v609, %v625
    %v642 = vmax.f32 %v610, %v626
    %v643 = vmax.f32 %v611, %v627
    %v644 = vmax.f32 %v612, %v628
    %s645 = scalar_lea.vmem [#allocation2], 64
    %v646 = vld [vmem:[%s645] sm:$0xf]
    %v647 = vld [vmem:[%s645 + $0x4] sm:$0xf]
    %v648 = vld [vmem:[%s645 + $0x8] sm:$0xf]
    %v649 = vld [vmem:[%s645 + $0xc] sm:$0xf]
    %v650 = vld [vmem:[%s645 + $0x10] sm:$0xf]
    %v651 = vld [vmem:[%s645 + $0x14] sm:$0xf]
    %v652 = vld [vmem:[%s645 + $0x18] sm:$0xf]
    %v653 = vld [vmem:[%s645 + $0x1c] sm:$0xf]
    %v654 = vld [vmem:[%s645 + $0x20] sm:$0xf]
    %v655 = vld [vmem:[%s645 + $0x24] sm:$0xf]
    %v656 = vld [vmem:[%s645 + $0x28] sm:$0xf]
    %v657 = vld [vmem:[%s645 + $0x2c] sm:$0xf]
    %v658 = vld [vmem:[%s645 + $0x30] sm:$0xf]
    %v659 = vld [vmem:[%s645 + $0x34] sm:$0xf]
    %v660 = vld [vmem:[%s645 + $0x38] sm:$0xf]
    %v661 = vld [vmem:[%s645 + $0x3c] sm:$0xf]
    %v662 = vpack.c.bf16 %v630, %v629
    %v663 = vpack.c.bf16 %v632, %v631
    %v664 = vpack.c.bf16 %v634, %v633
    %v665 = vpack.c.bf16 %v636, %v635
    %v666 = vpack.c.bf16 %v638, %v637
    %v667 = vpack.c.bf16 %v640, %v639
    %v668 = vpack.c.bf16 %v642, %v641
    %v669 = vpack.c.bf16 %v644, %v643
    %v686 = vunpack.c.l.b16 %v646
    %v687 = vunpack.c.l.b16 %v647
    %v688 = vunpack.c.l.b16 %v648
    %v689 = vunpack.c.l.b16 %v649
    %v690 = vunpack.c.l.b16 %v650
    %v691 = vunpack.c.l.b16 %v651
    %v692 = vunpack.c.l.b16 %v652
    %v693 = vunpack.c.l.b16 %v653
    %v694 = vunpack.c.l.b16 %v654
    %v695 = vunpack.c.l.b16 %v655
    %v696 = vunpack.c.l.b16 %v656
    %v697 = vunpack.c.l.b16 %v657
    %v698 = vunpack.c.l.b16 %v658
    %v699 = vunpack.c.l.b16 %v659
    %v700 = vunpack.c.l.b16 %v660
    %v701 = vunpack.c.l.b16 %v661
    %v702 = vpack.c.b16 %v687, %v686
    %v703 = vpack.c.b16 %v689, %v688
    %v704 = vpack.c.b16 %v691, %v690
    %v705 = vpack.c.b16 %v693, %v692
    %v706 = vpack.c.b16 %v695, %v694
    %v707 = vpack.c.b16 %v697, %v696
    %v708 = vpack.c.b16 %v699, %v698
    %v709 = vpack.c.b16 %v701, %v700
    %718 = vmatprep.subr.bf16.mxu0 0
    %719 = vmatpush1.bf16.msra.mxu0 %v702
    %720 = vmatprep.subr.bf16.mxu0 0
    %721 = vmatpush1.bf16.msra.mxu0 %v703
    %722 = vmatprep.subr.bf16.mxu0 0
    %723 = vmatpush1.bf16.msra.mxu0 %v704
    %724 = vmatprep.subr.bf16.mxu0 0
    %725 = vmatpush1.bf16.msra.mxu0 %v705
    %726 = vmatprep.subr.bf16.mxu0 0
    %727 = vmatpush1.bf16.msra.mxu0 %v706
    %728 = vmatprep.subr.bf16.mxu0 0
    %729 = vmatpush1.bf16.msra.mxu0 %v707
    %730 = vmatprep.subr.bf16.mxu0 0
    %731 = vmatpush1.bf16.msra.mxu0 %v708
    %732 = vmatprep.subr.bf16.mxu0 0
    %733 = vmatpush1.bf16.msra.mxu0 %v709
    %734 = vmatprep.subr.bf16.mxu0 0
    %735 = vmatpush1.bf16.msra.mxu0 0
    %736 = vmatprep.subr.bf16.mxu0 0
    %737 = vmatpush1.bf16.msra.mxu0 0
    %738 = vmatprep.subr.bf16.mxu0 0
    %739 = vmatpush1.bf16.msra.mxu0 0
    %740 = vmatprep.subr.bf16.mxu0 0
    %741 = vmatpush1.bf16.msra.mxu0 0
    %742 = vmatprep.subr.bf16.mxu0 0
    %743 = vmatpush1.bf16.msra.mxu0 0
    %744 = vmatprep.subr.bf16.mxu0 0
    %745 = vmatpush1.bf16.msra.mxu0 0
    %746 = vmatprep.subr.bf16.mxu0 0
    %747 = vmatpush1.bf16.msra.mxu0 0
    %748 = vmatprep.subr.bf16.mxu0 0
    %749 = vmatpush1.bf16.msra.mxu0 0
    %750 = vmatprep.mubr.bf16.mxu0 0
    %751 = vmatmul.mubr.bf16.gmra.mrb[0].mxu0 %v662
    %v752 = vpop.f32.mrb[0].mxu0
    %v753 = vadd.f32 0.0, %v752
    %v754 = vpop.f32.mrb[0].mxu0
    %v755 = vpop.f32.mrb[0].mxu0
    %v756 = vadd.f32 0.0, %v755
    %v757 = vpop.f32.mrb[0].mxu0
    %758 = vmatprep.mubr.bf16.mxu0 0
    %759 = vmatmul.mubr.bf16.gmra.mrb[0].mxu0 %v663
    %v760 = vpop.f32.mrb[0].mxu0
    %v761 = vadd.f32 0.0, %v760
    %v762 = vpop.f32.mrb[0].mxu0
    %v763 = vpop.f32.mrb[0].mxu0
    %v764 = vadd.f32 0.0, %v763
    %v765 = vpop.f32.mrb[0].mxu0
    %766 = vmatprep.mubr.bf16.mxu0 0
    %767 = vmatmul.mubr.bf16.gmra.mrb[0].mxu0 %v664
    %v768 = vpop.f32.mrb[0].mxu0
    %v769 = vadd.f32 0.0, %v768
    %v770 = vpop.f32.mrb[0].mxu0
    %v771 = vpop.f32.mrb[0].mxu0
    %v772 = vadd.f32 0.0, %v771
    %v773 = vpop.f32.mrb[0].mxu0
    %774 = vmatprep.mubr.bf16.mxu0 0
    %775 = vmatmul.mubr.bf16.gmra.mrb[0].mxu0 %v665
    %v776 = vpop.f32.mrb[0].mxu0
    %v777 = vadd.f32 0.0, %v776
    %v778 = vpop.f32.mrb[0].mxu0
    %v779 = vpop.f32.mrb[0].mxu0
    %v780 = vadd.f32 0.0, %v779
    %v781 = vpop.f32.mrb[0].mxu0
    %782 = vmatprep.mubr.bf16.mxu0 0
    %783 = vmatmul.mubr.bf16.gmra.mrb[0].mxu0 %v666
    %v784 = vpop.f32.mrb[0].mxu0
    %v785 = vadd.f32 0.0, %v784
    %v786 = vpop.f32.mrb[0].mxu0
    %v787 = vpop.f32.mrb[0].mxu0
    %v788 = vadd.f32 0.0, %v787
    %v789 = vpop.f32.mrb[0].mxu0
    %790 = vmatprep.mubr.bf16.mxu0 0
    %791 = vmatmul.mubr.bf16.gmra.mrb[0].mxu0 %v667
    %v792 = vpop.f32.mrb[0].mxu0
    %v793 = vadd.f32 0.0, %v792
    %v794 = vpop.f32.mrb[0].mxu0
    %v795 = vpop.f32.mrb[0].mxu0
    %v796 = vadd.f32 0.0, %v795
    %v797 = vpop.f32.mrb[0].mxu0
    %798 = vmatprep.mubr.bf16.mxu0 0
    %799 = vmatmul.mubr.bf16.gmra.mrb[0].mxu0 %v668
    %v800 = vpop.f32.mrb[0].mxu0
    %v801 = vadd.f32 0.0, %v800
    %v802 = vpop.f32.mrb[0].mxu0
    %v803 = vpop.f32.mrb[0].mxu0
    %v804 = vadd.f32 0.0, %v803
    %v805 = vpop.f32.mrb[0].mxu0
    %806 = vmatprep.mubr.bf16.mxu0 0
    %807 = vmatmul.mubr.bf16.gmra.mrb[0].mxu0 %v669
    %v808 = vpop.f32.mrb[0].mxu0
    %v809 = vadd.f32 0.0, %v808
    %v810 = vpop.f32.mrb[0].mxu0
    %v811 = vpop.f32.mrb[0].mxu0
    %v812 = vadd.f32 0.0, %v811
    %v813 = vpop.f32.mrb[0].mxu0
    %814 = vdwg.mxu0
    %v815 = vadd.f32 %v753, %v756
    %v816 = vadd.f32 %v815, %v761
    %v817 = vadd.f32 %v816, %v764
    %v818 = vadd.f32 %v817, %v769
    %v819 = vadd.f32 %v818, %v772
    %v820 = vadd.f32 %v819, %v777
    %v821 = vadd.f32 %v820, %v780
    %v822 = vadd.f32 %v821, %v785
    %v823 = vadd.f32 %v822, %v788
    %v824 = vadd.f32 %v823, %v793
    %v825 = vadd.f32 %v824, %v796
    %v826 = vadd.f32 %v825, %v801
    %v827 = vadd.f32 %v826, %v804
    %v828 = vadd.f32 %v827, %v809
    %v829 = vadd.f32 %v828, %v812
    %v830 = vrot.slane %v829, 4
    %v831 = vadd.f32 %v829, %v830
    %v832 = vrot.slane %v831, 2
    %v833 = vadd.f32 %v831, %v832
    %v834 = vrot.slane %v833, 1
    %v835 = vadd.f32 %v833, %v834
    %v836 = vmul.f32 %v753, %v753
    %v837 = vmul.f32 %v756, %v756
    %v838 = vmul.f32 %v761, %v761
    %v839 = vmul.f32 %v764, %v764
    %v840 = vmul.f32 %v769, %v769
    %v841 = vmul.f32 %v772, %v772
    %v842 = vmul.f32 %v777, %v777
    %v843 = vmul.f32 %v780, %v780
    %v844 = vmul.f32 %v785, %v785
    %v845 = vmul.f32 %v788, %v788
    %v846 = vmul.f32 %v793, %v793
    %v847 = vmul.f32 %v796, %v796
    %v848 = vmul.f32 %v801, %v801
    %v849 = vmul.f32 %v804, %v804
    %v850 = vmul.f32 %v809, %v809
    %v851 = vmul.f32 %v812, %v812
    %v852 = vadd.f32 %v836, %v837
    %v853 = vadd.f32 %v852, %v838
    %v854 = vadd.f32 %v853, %v839
    %v855 = vadd.f32 %v854, %v840
    %v856 = vadd.f32 %v855, %v841
    %v857 = vadd.f32 %v856, %v842
    %v858 = vadd.f32 %v857, %v843
    %v859 = vadd.f32 %v858, %v844
    %v860 = vadd.f32 %v859, %v845
    %v861 = vadd.f32 %v860, %v846
    %v862 = vadd.f32 %v861, %v847
    %v863 = vadd.f32 %v862, %v848
    %v864 = vadd.f32 %v863, %v849
    %v865 = vadd.f32 %v864, %v850
    %v866 = vadd.f32 %v865, %v851
    %v867 = vrot.slane %v866, 4
    %v868 = vadd.f32 %v866, %v867
    %v869 = vrot.slane %v868, 2
    %v870 = vadd.f32 %v868, %v869
    %v871 = vrot.slane %v870, 1
    %v872 = vadd.f32 %v870, %v871
    %v873 = vmul.f32 %v835, 0.0078125
    %v874 = vmul.f32 %v872, 0.0078125
    %v875 = vmul.f32 %v873, %v873
    %v876 = vsub.f32 %v874, %v875
    %v877 = vmax.f32 %v876, 0.0
    %s878 = scalar_lea.vmem %s3, 4
    %v879 = vld [vmem:[%s878] sm:$0x3]
    %v880 = vadd.f32 %v877, 1e-05
    %v881 = vrsqrt.pop %v880
    %v882 = vmul.f32 %v879, %v881
    %v883 = vmul.f32 %v873, %v882
    %v885 = vrot.slane %v883, 7
    %v887 = vsub.f32 %v879, %v885
    %v888 = vlaneseq
    %v889 = vshrl.u32 %v888, 7
    %v890 = vsub.s32 0, %v889
    %v891 = vrot.slane %v882, %v890
    %v892 = vmul.f32 %v753, %v891
    %v893 = vmul.f32 %v756, %v891
    %v894 = vmul.f32 %v761, %v891
    %v895 = vmul.f32 %v764, %v891
    %v896 = vmul.f32 %v769, %v891
    %v897 = vmul.f32 %v772, %v891
    %v898 = vmul.f32 %v777, %v891
    %v899 = vmul.f32 %v780, %v891
    %v900 = vmul.f32 %v785, %v891
    %v901 = vmul.f32 %v788, %v891
    %v902 = vmul.f32 %v793, %v891
    %v903 = vmul.f32 %v796, %v891
    %v904 = vmul.f32 %v801, %v891
    %v905 = vmul.f32 %v804, %v891
    %v906 = vmul.f32 %v809, %v891
    %v907 = vmul.f32 %v812, %v891
    %v908 = vlaneseq
    %v909 = vshrl.u32 %v908, 7
    %v910 = vsub.s32 1, %v909
    %v911 = vrot.slane %v887, %v910
    %v912 = vadd.f32 %v892, %v911
    %v913 = vadd.f32 %v893, %v911
    %v914 = vadd.f32 %v894, %v911
    %v915 = vadd.f32 %v895, %v911
    %v916 = vadd.f32 %v896, %v911
    %v917 = vadd.f32 %v897, %v911
    %v918 = vadd.f32 %v898, %v911
    %v919 = vadd.f32 %v899, %v911
    %v920 = vadd.f32 %v900, %v911
    %v921 = vadd.f32 %v901, %v911
    %v922 = vadd.f32 %v902, %v911
    %v923 = vadd.f32 %v903, %v911
    %v924 = vadd.f32 %v904, %v911
    %v925 = vadd.f32 %v905, %v911
    %v926 = vadd.f32 %v906, %v911
    %v927 = vadd.f32 %v907, %v911
    %v928 = vadd.f32 %v912, %v315
    %v929 = vadd.f32 %v913, %v316
    %v930 = vadd.f32 %v914, %v317
    %v931 = vadd.f32 %v915, %v318
    %v932 = vadd.f32 %v916, %v319
    %v933 = vadd.f32 %v917, %v320
    %v934 = vadd.f32 %v918, %v321
    %v935 = vadd.f32 %v919, %v322
    %v936 = vadd.f32 %v920, %v323
    %v937 = vadd.f32 %v921, %v324
    %v938 = vadd.f32 %v922, %v325
    %v939 = vadd.f32 %v923, %v326
    %v940 = vadd.f32 %v924, %v327
    %v941 = vadd.f32 %v925, %v328
    %v942 = vadd.f32 %v926, %v329
    %v943 = vadd.f32 %v927, %v330
    %v944 = vmul.f32 %v928, 0.2
    %v945 = vmul.f32 %v929, 0.2
    %v946 = vmul.f32 %v930, 0.2
    %v947 = vmul.f32 %v931, 0.2
    %v948 = vmul.f32 %v932, 0.2
    %v949 = vmul.f32 %v933, 0.2
    %v950 = vmul.f32 %v934, 0.2
    %v951 = vmul.f32 %v935, 0.2
    %v952 = vmul.f32 %v936, 0.2
    %v953 = vmul.f32 %v937, 0.2
    %v954 = vmul.f32 %v938, 0.2
    %v955 = vmul.f32 %v939, 0.2
    %v956 = vmul.f32 %v940, 0.2
    %v957 = vmul.f32 %v941, 0.2
    %v958 = vmul.f32 %v942, 0.2
    %v959 = vmul.f32 %v943, 0.2
    %v960 = vmax.f32 %v928, %v944
    %v961 = vmax.f32 %v929, %v945
    %v962 = vmax.f32 %v930, %v946
    %v963 = vmax.f32 %v931, %v947
    %v964 = vmax.f32 %v932, %v948
    %v965 = vmax.f32 %v933, %v949
    %v966 = vmax.f32 %v934, %v950
    %v967 = vmax.f32 %v935, %v951
    %v968 = vmax.f32 %v936, %v952
    %v969 = vmax.f32 %v937, %v953
    %v970 = vmax.f32 %v938, %v954
    %v971 = vmax.f32 %v939, %v955
    %v972 = vmax.f32 %v940, %v956
    %v973 = vmax.f32 %v941, %v957
    %v974 = vmax.f32 %v942, %v958
    %v975 = vmax.f32 %v943, %v959
    %s976 = scalar_lea.vmem [#allocation2], 128
    %v977 = vld [vmem:[%s976] sm:$0xf]
    %v978 = vld [vmem:[%s976 + $0x4] sm:$0xf]
    %v979 = vld [vmem:[%s976 + $0x8] sm:$0xf]
    %v980 = vld [vmem:[%s976 + $0xc] sm:$0xf]
    %v981 = vld [vmem:[%s976 + $0x10] sm:$0xf]
    %v982 = vld [vmem:[%s976 + $0x14] sm:$0xf]
    %v983 = vld [vmem:[%s976 + $0x18] sm:$0xf]
    %v984 = vld [vmem:[%s976 + $0x1c] sm:$0xf]
    %v985 = vld [vmem:[%s976 + $0x20] sm:$0xf]
    %v986 = vld [vmem:[%s976 + $0x24] sm:$0xf]
    %v987 = vld [vmem:[%s976 + $0x28] sm:$0xf]
    %v988 = vld [vmem:[%s976 + $0x2c] sm:$0xf]
    %v989 = vld [vmem:[%s976 + $0x30] sm:$0xf]
    %v990 = vld [vmem:[%s976 + $0x34] sm:$0xf]
    %v991 = vld [vmem:[%s976 + $0x38] sm:$0xf]
    %v992 = vld [vmem:[%s976 + $0x3c] sm:$0xf]
    %v993 = vpack.c.bf16 %v961, %v960
    %v994 = vpack.c.bf16 %v963, %v962
    %v995 = vpack.c.bf16 %v965, %v964
    %v996 = vpack.c.bf16 %v967, %v966
    %v997 = vpack.c.bf16 %v969, %v968
    %v998 = vpack.c.bf16 %v971, %v970
    %v999 = vpack.c.bf16 %v973, %v972
    %v1000 = vpack.c.bf16 %v975, %v974
    %v1017 = vunpack.c.l.b16 %v977
    %v1018 = vunpack.c.l.b16 %v978
    %v1019 = vunpack.c.l.b16 %v979
    %v1020 = vunpack.c.l.b16 %v980
    %v1021 = vunpack.c.l.b16 %v981
    %v1022 = vunpack.c.l.b16 %v982
    %v1023 = vunpack.c.l.b16 %v983
    %v1024 = vunpack.c.l.b16 %v984
    %v1025 = vunpack.c.l.b16 %v985
    %v1026 = vunpack.c.l.b16 %v986
    %v1027 = vunpack.c.l.b16 %v987
    %v1028 = vunpack.c.l.b16 %v988
    %v1029 = vunpack.c.l.b16 %v989
    %v1030 = vunpack.c.l.b16 %v990
    %v1031 = vunpack.c.l.b16 %v991
    %v1032 = vunpack.c.l.b16 %v992
    %v1033 = vpack.c.b16 %v1018, %v1017
    %v1034 = vpack.c.b16 %v1020, %v1019
    %v1035 = vpack.c.b16 %v1022, %v1021
    %v1036 = vpack.c.b16 %v1024, %v1023
    %v1037 = vpack.c.b16 %v1026, %v1025
    %v1038 = vpack.c.b16 %v1028, %v1027
    %v1039 = vpack.c.b16 %v1030, %v1029
    %v1040 = vpack.c.b16 %v1032, %v1031
    %1049 = vmatprep.subr.bf16.mxu0 0
    %1050 = vmatpush1.bf16.msra.mxu0 %v1033
    %1051 = vmatprep.subr.bf16.mxu0 0
    %1052 = vmatpush1.bf16.msra.mxu0 %v1034
    %1053 = vmatprep.subr.bf16.mxu0 0
    %1054 = vmatpush1.bf16.msra.mxu0 %v1035
    %1055 = vmatprep.subr.bf16.mxu0 0
    %1056 = vmatpush1.bf16.msra.mxu0 %v1036
    %1057 = vmatprep.subr.bf16.mxu0 0
    %1058 = vmatpush1.bf16.msra.mxu0 %v1037
    %1059 = vmatprep.subr.bf16.mxu0 0
    %1060 = vmatpush1.bf16.msra.mxu0 %v1038
    %1061 = vmatprep.subr.bf16.mxu0 0
    %1062 = vmatpush1.bf16.msra.mxu0 %v1039
    %1063 = vmatprep.subr.bf16.mxu0 0
    %1064 = vmatpush1.bf16.msra.mxu0 %v1040
    %1065 = vmatprep.subr.bf16.mxu0 0
    %1066 = vmatpush1.bf16.msra.mxu0 0
    %1067 = vmatprep.subr.bf16.mxu0 0
    %1068 = vmatpush1.bf16.msra.mxu0 0
    %1069 = vmatprep.subr.bf16.mxu0 0
    %1070 = vmatpush1.bf16.msra.mxu0 0
    %1071 = vmatprep.subr.bf16.mxu0 0
    %1072 = vmatpush1.bf16.msra.mxu0 0
    %1073 = vmatprep.subr.bf16.mxu0 0
    %1074 = vmatpush1.bf16.msra.mxu0 0
    %1075 = vmatprep.subr.bf16.mxu0 0
    %1076 = vmatpush1.bf16.msra.mxu0 0
    %1077 = vmatprep.subr.bf16.mxu0 0
    %1078 = vmatpush1.bf16.msra.mxu0 0
    %1079 = vmatprep.subr.bf16.mxu0 0
    %1080 = vmatpush1.bf16.msra.mxu0 0
    %1081 = vmatprep.mubr.bf16.mxu0 0
    %1082 = vmatmul.mubr.bf16.gmra.mrb[0].mxu0 %v993
    %v1083 = vpop.f32.mrb[0].mxu0
    %v1084 = vadd.f32 0.0, %v1083
    %v1085 = vpop.f32.mrb[0].mxu0
    %v1086 = vpop.f32.mrb[0].mxu0
    %v1087 = vadd.f32 0.0, %v1086
    %v1088 = vpop.f32.mrb[0].mxu0
    %1089 = vmatprep.mubr.bf16.mxu0 0
    %1090 = vmatmul.mubr.bf16.gmra.mrb[0].mxu0 %v994
    %v1091 = vpop.f32.mrb[0].mxu0
    %v1092 = vadd.f32 0.0, %v1091
    %v1093 = vpop.f32.mrb[0].mxu0
    %v1094 = vpop.f32.mrb[0].mxu0
    %v1095 = vadd.f32 0.0, %v1094
    %v1096 = vpop.f32.mrb[0].mxu0
    %1097 = vmatprep.mubr.bf16.mxu0 0
    %1098 = vmatmul.mubr.bf16.gmra.mrb[0].mxu0 %v995
    %v1099 = vpop.f32.mrb[0].mxu0
    %v1100 = vadd.f32 0.0, %v1099
    %v1101 = vpop.f32.mrb[0].mxu0
    %v1102 = vpop.f32.mrb[0].mxu0
    %v1103 = vadd.f32 0.0, %v1102
    %v1104 = vpop.f32.mrb[0].mxu0
    %1105 = vmatprep.mubr.bf16.mxu0 0
    %1106 = vmatmul.mubr.bf16.gmra.mrb[0].mxu0 %v996
    %v1107 = vpop.f32.mrb[0].mxu0
    %v1108 = vadd.f32 0.0, %v1107
    %v1109 = vpop.f32.mrb[0].mxu0
    %v1110 = vpop.f32.mrb[0].mxu0
    %v1111 = vadd.f32 0.0, %v1110
    %v1112 = vpop.f32.mrb[0].mxu0
    %1113 = vmatprep.mubr.bf16.mxu0 0
    %1114 = vmatmul.mubr.bf16.gmra.mrb[0].mxu0 %v997
    %v1115 = vpop.f32.mrb[0].mxu0
    %v1116 = vadd.f32 0.0, %v1115
    %v1117 = vpop.f32.mrb[0].mxu0
    %v1118 = vpop.f32.mrb[0].mxu0
    %v1119 = vadd.f32 0.0, %v1118
    %v1120 = vpop.f32.mrb[0].mxu0
    %1121 = vmatprep.mubr.bf16.mxu0 0
    %1122 = vmatmul.mubr.bf16.gmra.mrb[0].mxu0 %v998
    %v1123 = vpop.f32.mrb[0].mxu0
    %v1124 = vadd.f32 0.0, %v1123
    %v1125 = vpop.f32.mrb[0].mxu0
    %v1126 = vpop.f32.mrb[0].mxu0
    %v1127 = vadd.f32 0.0, %v1126
    %v1128 = vpop.f32.mrb[0].mxu0
    %1129 = vmatprep.mubr.bf16.mxu0 0
    %1130 = vmatmul.mubr.bf16.gmra.mrb[0].mxu0 %v999
    %v1131 = vpop.f32.mrb[0].mxu0
    %v1132 = vadd.f32 0.0, %v1131
    %v1133 = vpop.f32.mrb[0].mxu0
    %v1134 = vpop.f32.mrb[0].mxu0
    %v1135 = vadd.f32 0.0, %v1134
    %v1136 = vpop.f32.mrb[0].mxu0
    %1137 = vmatprep.mubr.bf16.mxu0 0
    %1138 = vmatmul.mubr.bf16.gmra.mrb[0].mxu0 %v1000
    %v1139 = vpop.f32.mrb[0].mxu0
    %v1140 = vadd.f32 0.0, %v1139
    %v1141 = vpop.f32.mrb[0].mxu0
    %v1142 = vpop.f32.mrb[0].mxu0
    %v1143 = vadd.f32 0.0, %v1142
    %v1144 = vpop.f32.mrb[0].mxu0
    %1145 = vdwg.mxu0
    %v1146 = vadd.f32 %v1084, %v1087
    %v1147 = vadd.f32 %v1146, %v1092
    %v1148 = vadd.f32 %v1147, %v1095
    %v1149 = vadd.f32 %v1148, %v1100
    %v1150 = vadd.f32 %v1149, %v1103
    %v1151 = vadd.f32 %v1150, %v1108
    %v1152 = vadd.f32 %v1151, %v1111
    %v1153 = vadd.f32 %v1152, %v1116
    %v1154 = vadd.f32 %v1153, %v1119
    %v1155 = vadd.f32 %v1154, %v1124
    %v1156 = vadd.f32 %v1155, %v1127
    %v1157 = vadd.f32 %v1156, %v1132
    %v1158 = vadd.f32 %v1157, %v1135
    %v1159 = vadd.f32 %v1158, %v1140
    %v1160 = vadd.f32 %v1159, %v1143
    %v1161 = vrot.slane %v1160, 4
    %v1162 = vadd.f32 %v1160, %v1161
    %v1163 = vrot.slane %v1162, 2
    %v1164 = vadd.f32 %v1162, %v1163
    %v1165 = vrot.slane %v1164, 1
    %v1166 = vadd.f32 %v1164, %v1165
    %v1167 = vmul.f32 %v1084, %v1084
    %v1168 = vmul.f32 %v1087, %v1087
    %v1169 = vmul.f32 %v1092, %v1092
    %v1170 = vmul.f32 %v1095, %v1095
    %v1171 = vmul.f32 %v1100, %v1100
    %v1172 = vmul.f32 %v1103, %v1103
    %v1173 = vmul.f32 %v1108, %v1108
    %v1174 = vmul.f32 %v1111, %v1111
    %v1175 = vmul.f32 %v1116, %v1116
    %v1176 = vmul.f32 %v1119, %v1119
    %v1177 = vmul.f32 %v1124, %v1124
    %v1178 = vmul.f32 %v1127, %v1127
    %v1179 = vmul.f32 %v1132, %v1132
    %v1180 = vmul.f32 %v1135, %v1135
    %v1181 = vmul.f32 %v1140, %v1140
    %v1182 = vmul.f32 %v1143, %v1143
    %v1183 = vadd.f32 %v1167, %v1168
    %v1184 = vadd.f32 %v1183, %v1169
    %v1185 = vadd.f32 %v1184, %v1170
    %v1186 = vadd.f32 %v1185, %v1171
    %v1187 = vadd.f32 %v1186, %v1172
    %v1188 = vadd.f32 %v1187, %v1173
    %v1189 = vadd.f32 %v1188, %v1174
    %v1190 = vadd.f32 %v1189, %v1175
    %v1191 = vadd.f32 %v1190, %v1176
    %v1192 = vadd.f32 %v1191, %v1177
    %v1193 = vadd.f32 %v1192, %v1178
    %v1194 = vadd.f32 %v1193, %v1179
    %v1195 = vadd.f32 %v1194, %v1180
    %v1196 = vadd.f32 %v1195, %v1181
    %v1197 = vadd.f32 %v1196, %v1182
    %v1198 = vrot.slane %v1197, 4
    %v1199 = vadd.f32 %v1197, %v1198
    %v1200 = vrot.slane %v1199, 2
    %v1201 = vadd.f32 %v1199, %v1200
    %v1202 = vrot.slane %v1201, 1
    %v1203 = vadd.f32 %v1201, %v1202
    %v1204 = vmul.f32 %v1166, 0.0078125
    %v1205 = vmul.f32 %v1203, 0.0078125
    %v1206 = vmul.f32 %v1204, %v1204
    %v1207 = vsub.f32 %v1205, %v1206
    %v1208 = vmax.f32 %v1207, 0.0
    %s1209 = scalar_lea.vmem %s3, 6
    %v1210 = vld [vmem:[%s1209] sm:$0x3]
    %v1211 = vadd.f32 %v1208, 1e-05
    %v1212 = vrsqrt.pop %v1211
    %v1213 = vmul.f32 %v1210, %v1212
    %v1214 = vmul.f32 %v1204, %v1213
    %v1216 = vrot.slane %v1214, 7
    %v1218 = vsub.f32 %v1210, %v1216
    %v1219 = vlaneseq
    %v1220 = vshrl.u32 %v1219, 7
    %v1221 = vsub.s32 0, %v1220
    %v1222 = vrot.slane %v1213, %v1221
    %v1223 = vmul.f32 %v1084, %v1222
    %v1224 = vmul.f32 %v1087, %v1222
    %v1225 = vmul.f32 %v1092, %v1222
    %v1226 = vmul.f32 %v1095, %v1222
    %v1227 = vmul.f32 %v1100, %v1222
    %v1228 = vmul.f32 %v1103, %v1222
    %v1229 = vmul.f32 %v1108, %v1222
    %v1230 = vmul.f32 %v1111, %v1222
    %v1231 = vmul.f32 %v1116, %v1222
    %v1232 = vmul.f32 %v1119, %v1222
    %v1233 = vmul.f32 %v1124, %v1222
    %v1234 = vmul.f32 %v1127, %v1222
    %v1235 = vmul.f32 %v1132, %v1222
    %v1236 = vmul.f32 %v1135, %v1222
    %v1237 = vmul.f32 %v1140, %v1222
    %v1238 = vmul.f32 %v1143, %v1222
    %v1239 = vlaneseq
    %v1240 = vshrl.u32 %v1239, 7
    %v1241 = vsub.s32 1, %v1240
    %v1242 = vrot.slane %v1218, %v1241
    %v1243 = vadd.f32 %v1223, %v1242
    %v1244 = vadd.f32 %v1224, %v1242
    %v1245 = vadd.f32 %v1225, %v1242
    %v1246 = vadd.f32 %v1226, %v1242
    %v1247 = vadd.f32 %v1227, %v1242
    %v1248 = vadd.f32 %v1228, %v1242
    %v1249 = vadd.f32 %v1229, %v1242
    %v1250 = vadd.f32 %v1230, %v1242
    %v1251 = vadd.f32 %v1231, %v1242
    %v1252 = vadd.f32 %v1232, %v1242
    %v1253 = vadd.f32 %v1233, %v1242
    %v1254 = vadd.f32 %v1234, %v1242
    %v1255 = vadd.f32 %v1235, %v1242
    %v1256 = vadd.f32 %v1236, %v1242
    %v1257 = vadd.f32 %v1237, %v1242
    %v1258 = vadd.f32 %v1238, %v1242
    %1259 = vst [vmem:[#allocation5] sm:$0xff] %v1243
    %1260 = vst [vmem:[#allocation5 + $0x8] sm:$0xff] %v1244
    %1261 = vst [vmem:[#allocation5 + $0x10] sm:$0xff] %v1245
    %1262 = vst [vmem:[#allocation5 + $0x18] sm:$0xff] %v1246
    %1263 = vst [vmem:[#allocation5 + $0x20] sm:$0xff] %v1247
    %1264 = vst [vmem:[#allocation5 + $0x28] sm:$0xff] %v1248
    %1265 = vst [vmem:[#allocation5 + $0x30] sm:$0xff] %v1249
    %1266 = vst [vmem:[#allocation5 + $0x38] sm:$0xff] %v1250
    %1267 = vst [vmem:[#allocation5 + $0x40] sm:$0xff] %v1251
    %1268 = vst [vmem:[#allocation5 + $0x48] sm:$0xff] %v1252
    %1269 = vst [vmem:[#allocation5 + $0x50] sm:$0xff] %v1253
    %1270 = vst [vmem:[#allocation5 + $0x58] sm:$0xff] %v1254
    %1271 = vst [vmem:[#allocation5 + $0x60] sm:$0xff] %v1255
    %1272 = vst [vmem:[#allocation5 + $0x68] sm:$0xff] %v1256
    %1273 = vst [vmem:[#allocation5 + $0x70] sm:$0xff] %v1257
    %1274 = vst [vmem:[#allocation5 + $0x78] sm:$0xff] %v1258
    // Predicated region
    $region22: #{tpu_custom_call.1} parent=1 // pred_check
      _
    $region23: #{tpu_custom_call.1} parent=1 // pred_check_branch
      %1276 = sbr.rel (0) target = $region25
    $region24: #{tpu_custom_call.1} parent=1 // pred_region
      %s1278 = ssub.s32 2048, 2048
      %1279 = vsyncadd [#allocation4], %s1278
      %s1280 = sshll.u32 [#allocation5], 4
      %s1281 = int_to_ptr.vmem [resolvable:$true] %s1280
      %1286 = dma.vmem_to_hbm [thread:$0]  %s1281, 2048, %s4, [#allocation4], 128, 128, 8
    $region25: #{tpu_custom_call.1} parent=1 // pred_fallthru
      _
    // Predicated region
    $region26: #{tpu_custom_call.1} parent=1 // pred_check
      _
    $region27: #{tpu_custom_call.1} parent=1 // pred_check_branch
      %1288 = sbr.rel (0) target = $region29
    $region28: #{tpu_custom_call.1} parent=1 // pred_region
      %1289 = dma.done [#allocation4], 2048
    $region29: #{tpu_custom_call.1} parent=1 // pred_fallthru
      _
    %1290 = vsyncpa [#allocation3], 1
    %1291 = vsyncpa [#allocation4], 1

</llo_original>
